<compile_context>
chip_gen: v5e
topology: v5e:2x2
jax: 0.10.0
libtpu: 0.0.40
codegen_flags: <defaults>
</compile_context>

<pallas_src>
import functools

import jax
import jax.numpy as jnp
from jax import lax
from jax.experimental import pallas as pl
from jax.experimental.pallas import tpu as pltpu


# ----------------------------------------------------------------------------
# helpers
# ----------------------------------------------------------------------------
def _round_up(x, m):
    return ((x + m - 1) // m) * m


def _pad2d(x, rows, cols):
    r, c = x.shape
    if r == rows and c == cols:
        return x
    return jnp.pad(x, ((0, rows - r), (0, cols - c)))


@functools.lru_cache(maxsize=None)
def _vmem_limit_bytes():
    """VMEM budget for the pipelined kernels, re-derived per chip generation."""
    cap = None
    try:
        cap = getattr(pltpu.get_tpu_info(), "vmem_capacity_bytes", None)
    except Exception:
        cap = None
    if not cap:
        cap = 64 * 1024 * 1024          # conservative (v7x per-TC size)
    # Leave headroom for compiler-internal scratch / double buffers.
    return int(min(cap * 3 // 4, 100 * 1024 * 1024))


def _choose_tiles(M, K, Dp, vmem_limit, resident_bytes):
    """Largest (tm, tk) from the candidate list whose footprint fits VMEM."""
    cands = (2048, 1024, 512, 256, 128)
    for tm in cands:
        if M % tm:
            continue
        for tk in cands:
            if K % tk:
                continue
            footprint = (
                2 * tm * tk * 2        # R tile, double-buffered bf16
                + 2 * tm * Dp * 2      # row-embedding tile, double-buffered bf16
                + 2 * tm * Dp * 4      # rows output block, double-buffered f32
                + resident_bytes       # resident col embeddings + cols output
            )
            if footprint <= int(vmem_limit * 0.85):
                return tm, tk
    # TODO(synk): for graphs whose small side no longer fits resident in VMEM,
    # fall back to the two-kernel (non-fused) scheme or HBM accumulation.
    return 128, 128


# ----------------------------------------------------------------------------
# Kernel 1: fused bipartite propagation layer (single pass over the graph)
#   out_rows[M, Dp] = R[M, K]   @ E_cols[K, Dp]
#   out_cols[K, Dp] = R[M, K]^T @ E_rows[M, Dp]
# Grid = (M // tm, K // tk); both axes carry a reduction -> "arbitrary".
# ----------------------------------------------------------------------------
def _fused_layer_kernel(r_ref, e_rows_ref, e_cols_ref,
                        out_rows_ref, out_cols_ref, *, tk):
    i = pl.program_id(0)
    k = pl.program_id(1)

    # rows-side accumulator: output block index (i, 0) is constant over k.
    @pl.when(k == 0)
    def _init_rows():
        out_rows_ref[...] = jnp.zeros_like(out_rows_ref)

    # cols-side accumulator: output block index (0, 0) is constant over the
    # entire grid -> resident in VMEM until the end of the grid.
    @pl.when((i == 0) & (k == 0))
    def _init_cols():
        out_cols_ref[...] = jnp.zeros_like(out_cols_ref)

    r_tile = r_ref[...]                                   # (tm, tk) bf16
    off = pl.multiple_of(k * tk, tk)

    # rows half-step: out_rows[i] += R[i,k] @ E_cols[k]
    out_rows_ref[...] += jnp.dot(
        r_tile, e_cols_ref[pl.ds(off, tk), :],
        preferred_element_type=jnp.float32)

    # cols half-step: out_cols[k] += R[i,k]^T @ E_rows[i]
    contrib = lax.dot_general(
        r_tile, e_rows_ref[...],
        dimension_numbers=(((0,), (0,)), ((), ())),
        preferred_element_type=jnp.float32)
    out_cols_ref[pl.ds(off, tk), :] += contrib


def fused_bipartite_layer(r_bf16, e_rows_bf16, e_cols_bf16):
    """One LightGCN propagation layer over the (padded) bipartite graph.

    Returns (R @ e_cols, R^T @ e_rows) in f32, streaming R from HBM once.
    """
    M, K = r_bf16.shape
    Mr, Dp = e_rows_bf16.shape
    Kc, Dc = e_cols_bf16.shape
    assert (Mr, Kc, Dc) == (M, K, Dp), (r_bf16.shape, e_rows_bf16.shape,
                                        e_cols_bf16.shape)

    vmem_limit = _vmem_limit_bytes()
    # resident pieces: col embeddings (bf16) + cols output (f32), x2 buffers.
    resident_bytes = 2 * K * Dp * (2 + 4)
    tm, tk = _choose_tiles(M, K, Dp, vmem_limit, resident_bytes)

    kernel = functools.partial(_fused_layer_kernel, tk=tk)

    return pl.pallas_call(
        kernel,
        out_shape=(
            jax.ShapeDtypeStruct((M, Dp), jnp.float32),
            jax.ShapeDtypeStruct((K, Dp), jnp.float32),
        ),
        grid_spec=pltpu.PrefetchScalarGridSpec(
            num_scalar_prefetch=0,
            grid=(M // tm, K // tk),
            in_specs=[
                pl.BlockSpec((tm, tk), lambda i, k: (i, k)),   # graph tile stream
                pl.BlockSpec((tm, Dp), lambda i, k: (i, 0)),   # row emb (const over k)
                pl.BlockSpec((K, Dp), lambda i, k: (0, 0)),    # col emb, VMEM-resident
            ],
            out_specs=[
                pl.BlockSpec((tm, Dp), lambda i, k: (i, 0)),   # rows: per-row-tile acc
                pl.BlockSpec((K, Dp), lambda i, k: (0, 0)),    # cols: grid-resident acc
            ],
        ),
        compiler_params=pltpu.CompilerParams(
            # Both grid axes carry a reduction (rows over k, cols over i), so
            # they must run sequentially.
            # TODO(synk): on v7x, recover 2-TensorCore parallelism with an
            # explicit core_map split of the row-tile axis (per-core partial
            # cols outputs reduced afterwards).
            dimension_semantics=("arbitrary", "arbitrary"),
            vmem_limit_bytes=vmem_limit,
        ),
    )(r_bf16, e_rows_bf16, e_cols_bf16)


# ----------------------------------------------------------------------------
# Kernel 2: forward scoring, lane-dense output
#   gamma[b] = sum_d users_emb[b, d] * items_emb[b, d]
#   Inputs are fed transposed (D, B) so the reduction runs over sublanes and
#   the output row (1, TB) is lane-dense (no masked partial stores).
# ----------------------------------------------------------------------------
def _score_kernel(ut_ref, it_ref, o_ref):
    prod = ut_ref[...] * it_ref[...]                     # (D, TB) f32 on VPU
    o_ref[...] = jnp.sum(prod, axis=0, keepdims=True)    # (1, TB)


def lightgcn_score(users_emb, items_emb):
    B, D = users_emb.shape
    TB = min(1024, _round_up(B, 128))
    B_pad = _round_up(B, TB)
    D_pad = _round_up(D, 8)

    u_t = _pad2d(users_emb.T.astype(jnp.float32), D_pad, B_pad)
    i_t = _pad2d(items_emb.T.astype(jnp.float32), D_pad, B_pad)

    out = pl.pallas_call(
        _score_kernel,
        out_shape=jax.ShapeDtypeStruct((1, B_pad), jnp.float32),
        grid_spec=pltpu.PrefetchScalarGridSpec(
            num_scalar_prefetch=0,
            grid=(B_pad // TB,),
            in_specs=[
                pl.BlockSpec((D_pad, TB), lambda b: (0, b)),
                pl.BlockSpec((D_pad, TB), lambda b: (0, b)),
            ],
            out_specs=pl.BlockSpec((1, TB), lambda b: (0, b)),
        ),
        compiler_params=pltpu.CompilerParams(
            dimension_semantics=("parallel",),
            vmem_limit_bytes=_vmem_limit_bytes(),
        ),
    )(u_t, i_t)
    return out[0, :B]


# ----------------------------------------------------------------------------
# Model wrapper (parameter init + glue)
# ----------------------------------------------------------------------------
class LightGCNPallas:
    def __init__(self, num_users, num_items, latent_dim=128, n_layers=3, seed=0):
        self.num_users = num_users
        self.num_items = num_items
        self.latent_dim = latent_dim
        self.n_layers = n_layers

        key = jax.random.PRNGKey(seed)
        k_u, k_i, k_g = jax.random.split(key, 3)

        # nn.init.normal_(std=0.1) on both embedding tables.
        self.embedding_user = 0.1 * jax.random.normal(
            k_u, (num_users, latent_dim), dtype=jnp.float32)
        self.embedding_item = 0.1 * jax.random.normal(
            k_i, (num_items, latent_dim), dtype=jnp.float32)

        # Deterministic synthetic bipartite interaction matrix R (stand-in for
        # dataset.getSparseGraph()).  The full normalized graph is
        #   G = [[0, Rn], [Rn^T, 0]],  Rn = Du^{-1/2} R Di^{-1/2}
        # and only the single nonzero quadrant Rn is ever stored / streamed.
        r = (jax.random.uniform(k_g, (num_users, num_items)) < 0.1).astype(jnp.float32)
        deg_u = r.sum(axis=1)
        deg_i = r.sum(axis=0)
        du = jnp.where(deg_u > 0, 1.0 / jnp.sqrt(deg_u), 0.0)
        di = jnp.where(deg_i > 0, 1.0 / jnp.sqrt(deg_i), 0.0)
        # f32 copy kept only for the toy-scale reference path (forward_ref);
        # do not materialize at production scale.
        self.r_norm = r * du[:, None] * di[None, :]

        # Padded sizes: every dim that appears as a lane (last) dim of a matmul
        # operand is rounded up to a multiple of 128.
        self._u_pad = _round_up(num_users, 128)
        self._i_pad = _round_up(num_items, 128)
        self._d_pad = _round_up(latent_dim, 128)

        # Single bf16 copy of the graph, oriented with the LARGER bipartite
        # side as rows; the smaller side's output stays VMEM-resident in the
        # fused kernel.  (No second R^T copy.)
        self._rows_are_users = self._u_pad >= self._i_pad
        if self._rows_are_users:
            self._r_bf16 = _pad2d(self.r_norm, self._u_pad, self._i_pad
                                  ).astype(jnp.bfloat16)
        else:
            self._r_bf16 = _pad2d(self.r_norm.T, self._i_pad, self._u_pad
                                  ).astype(jnp.bfloat16)

        # TODO(synk): sparse-graph dropout (__dropout_x) has no clean dense /
        # Pallas equivalent; forward() uses the eval path (dropout_bool=False).
        # TODO(synk): for production graphs replace the dense bf16 R with a
        # blocked-sparse layout (per-row-tile column table via scalar prefetch,
        # skipping all-zero K tiles with pl.when).

    # LightGCN propagation: mean of [E, G@E, G^2@E, ...] using the bipartite
    # block structure; ONE fused kernel per layer streams the graph once.
    def computer(self):
        cur_u = _pad2d(self.embedding_user, self._u_pad, self._d_pad)   # f32
        cur_i = _pad2d(self.embedding_item, self._i_pad, self._d_pad)   # f32
        acc_u, acc_i = cur_u, cur_i
        for _ in range(self.n_layers):
            u_bf = cur_u.astype(jnp.bfloat16)
            i_bf = cur_i.astype(jnp.bfloat16)
            if self._rows_are_users:
                new_u, new_i = fused_bipartite_layer(self._r_bf16, u_bf, i_bf)
            else:
                new_i, new_u = fused_bipartite_layer(self._r_bf16, i_bf, u_bf)
            cur_u, cur_i = new_u, new_i
            # TODO(synk): fuse the bf16 cast + running layer-sum into the kernel
            # epilogue; it is O(N*D) XLA glue vs the O(U*I) graph stream.
            acc_u = acc_u + new_u
            acc_i = acc_i + new_i
        scale = jnp.float32(1.0 / (self.n_layers + 1))
        users = (acc_u * scale)[: self.num_users, : self.latent_dim]
        items = (acc_i * scale)[: self.num_items, : self.latent_dim]
        return users, items

    def forward(self, users, items):
        all_users, all_items = self.computer()
        users_emb = all_users[users]   # gather glue (XLA)
        items_emb = all_items[items]   # gather glue (XLA)
        return lightgcn_score(users_emb, items_emb)

    # Pure-JAX f32 reference on the full dense normalized graph, mirroring the
    # PyTorch computer()/forward() exactly.  Toy-scale only (builds (U+I)^2).
    def forward_ref(self, users, items):
        U, I = self.num_users, self.num_items
        N = U + I
        g = jnp.zeros((N, N), dtype=jnp.float32)
        g = g.at[:U, U:].set(self.r_norm)
        g = g.at[U:, :U].set(self.r_norm.T)
        all_emb = jnp.concatenate([self.embedding_user, self.embedding_item], axis=0)
        embs = [all_emb]
        cur = all_emb
        for _ in range(self.n_layers):
            cur = g @ cur
            embs.append(cur)
        all_out = jnp.mean(jnp.stack(embs), axis=0)
        u = all_out[:U][users]
        i = all_out[U:][items]
        return jnp.sum(u * i, axis=1)


if __name__ == "__main__":
    num_users, num_items, latent_dim, n_layers, batch = 48, 80, 128, 3, 8

    model = LightGCNPallas(num_users, num_items, latent_dim, n_layers, seed=0)

    key = jax.random.PRNGKey(0)
    k1, k2 = jax.random.split(key)
    users = jax.random.randint(k1, (batch,), 0, num_users, dtype=jnp.int32)
    items = jax.random.randint(k2, (batch,), 0, num_items, dtype=jnp.int32)

    gamma = model.forward(users, items)
    gamma = jax.block_until_ready(gamma)

    gamma_ref = model.forward_ref(users, items)
    assert gamma.shape == (batch,)
    # bf16 graph / per-layer operands => relaxed tolerance vs f32 reference.
    assert jnp.allclose(gamma, gamma_ref, atol=2e-3, rtol=2e-2), (
        f"mismatch: {gamma} vs {gamma_ref}")

    print("KERNEL_OK")
</pallas_src>

<mosaic_0001>
module attributes {stable_mosaic.version = 11 : i64} {
  func.func @_fused_layer_kernel(%arg0: i32, %arg1: i32, %arg2: memref<128x128xbf16, #tpu.memory_space<vmem>>, %arg3: memref<128x128xbf16, #tpu.memory_space<vmem>>, %arg4: memref<128x128xbf16, #tpu.memory_space<vmem>>, %arg5: memref<128x128xf32, #tpu.memory_space<vmem>>, %arg6: memref<128x128xf32, #tpu.memory_space<vmem>>) attributes {dimension_semantics = [#tpu.dimension_semantics<arbitrary>, #tpu.dimension_semantics<arbitrary>], iteration_bounds = array<i64: 1, 1>, scalar_prefetch = 0 : i64, scratch_operands = 0 : i64, tpu.core_type = #tpu.core_type<tc>, window_params = [{transform_indices = @transform_0, window_bounds = array<i64: 128, 128>}, {transform_indices = @transform_1, window_bounds = array<i64: 128, 128>}, {pipeline_mode = #tpu.pipeline_mode<synchronous>, transform_indices = @transform_2, window_bounds = array<i64: 128, 128>}, {transform_indices = @transform_3, window_bounds = array<i64: 128, 128>}, {pipeline_mode = #tpu.pipeline_mode<synchronous>, transform_indices = @transform_4, window_bounds = array<i64: 128, 128>}]} {
    %c0_i32 = arith.constant 0 : i32
    %0 = arith.cmpi eq, %arg1, %c0_i32 : i32
    %1 = arith.extui %0 : i1 to i32
    %c0_i32_0 = arith.constant 0 : i32
    %2 = arith.cmpi ne, %1, %c0_i32_0 : i32
    scf.if %2 {
      %cst_15 = arith.constant 0.000000e+00 : f32
      %24 = vector.broadcast %cst_15 : f32 to vector<128x128xf32>
      %c0_16 = arith.constant 0 : index
      %c0_17 = arith.constant 0 : index
      %25 = vector.load %arg5[%c0_16, %c0_17] : memref<128x128xf32, #tpu.memory_space<vmem>>, vector<128x128xf32>
      tpu.vector_store %arg5[%c0_16, %c0_17], %24 {strides = array<i32>} : memref<128x128xf32, #tpu.memory_space<vmem>>, vector<128x128xf32>,
    } else {
    }
    %c0_i32_1 = arith.constant 0 : i32
    %3 = arith.cmpi eq, %arg0, %c0_i32_1 : i32
    %c0_i32_2 = arith.constant 0 : i32
    %4 = arith.cmpi eq, %arg1, %c0_i32_2 : i32
    %5 = arith.andi %3, %4 : i1
    %6 = arith.extui %5 : i1 to i32
    %c0_i32_3 = arith.constant 0 : i32
    %7 = arith.cmpi ne, %6, %c0_i32_3 : i32
    scf.if %7 {
      %cst_15 = arith.constant 0.000000e+00 : f32
      %24 = vector.broadcast %cst_15 : f32 to vector<128x128xf32>
      %c0_16 = arith.constant 0 : index
      %c0_17 = arith.constant 0 : index
      %25 = vector.load %arg6[%c0_16, %c0_17] : memref<128x128xf32, #tpu.memory_space<vmem>>, vector<128x128xf32>
      tpu.vector_store %arg6[%c0_16, %c0_17], %24 {strides = array<i32>} : memref<128x128xf32, #tpu.memory_space<vmem>>, vector<128x128xf32>,
    } else {
    }
    %c0 = arith.constant 0 : index
    %c0_4 = arith.constant 0 : index
    %8 = vector.load %arg2[%c0, %c0_4] : memref<128x128xbf16, #tpu.memory_space<vmem>>, vector<128x128xbf16>
    %c128_i32 = arith.constant 128 : i32
    %9 = arith.muli %arg1, %c128_i32 : i32
    %10 = tpu.assume_multiple %9, 128 : i32
    %c0_5 = arith.constant 0 : index
    %c0_6 = arith.constant 0 : index
    %11 = vector.load %arg5[%c0_5, %c0_6] : memref<128x128xf32, #tpu.memory_space<vmem>>, vector<128x128xf32>
    %12 = arith.index_cast %10 : i32 to index
    %c0_7 = arith.constant 0 : index
    %13 = vector.load %arg4[%12, %c0_7] : memref<128x128xbf16, #tpu.memory_space<vmem>>, vector<128x128xbf16>
    %cst = arith.constant dense<0.000000e+00> : vector<128x128xf32>
    %14 = tpu.matmul %8, %13, %cst {dimension_numbers = #tpu.dot_dimension_numbers<[1], [0], [0], [1], [0, 0, 1, 1], [], []>} : vector<128x128xbf16>, vector<128x128xbf16>, vector<128x128xf32> -> vector<128x128xf32>
    %15 = arith.addf %11, %14 : vector<128x128xf32>
    %c0_8 = arith.constant 0 : index
    %c0_9 = arith.constant 0 : index
    %16 = vector.load %arg5[%c0_8, %c0_9] : memref<128x128xf32, #tpu.memory_space<vmem>>, vector<128x128xf32>
    tpu.vector_store %arg5[%c0_8, %c0_9], %15 {strides = array<i32>} : memref<128x128xf32, #tpu.memory_space<vmem>>, vector<128x128xf32>,
    %c0_10 = arith.constant 0 : index
    %c0_11 = arith.constant 0 : index
    %17 = vector.load %arg3[%c0_10, %c0_11] : memref<128x128xbf16, #tpu.memory_space<vmem>>, vector<128x128xbf16>
    %cst_12 = arith.constant dense<0.000000e+00> : vector<128x128xf32>
    %18 = tpu.matmul %8, %17, %cst_12 {dimension_numbers = #tpu.dot_dimension_numbers<[0], [0], [1], [1], [0, 1, 1, 1], [], []>} : vector<128x128xbf16>, vector<128x128xbf16>, vector<128x128xf32> -> vector<128x128xf32>
    %19 = arith.index_cast %10 : i32 to index
    %c0_13 = arith.constant 0 : index
    %20 = vector.load %arg6[%19, %c0_13] : memref<128x128xf32, #tpu.memory_space<vmem>>, vector<128x128xf32>
    %21 = arith.addf %20, %18 : vector<128x128xf32>
    %22 = arith.index_cast %10 : i32 to index
    %c0_14 = arith.constant 0 : index
    %23 = vector.load %arg6[%22, %c0_14] : memref<128x128xf32, #tpu.memory_space<vmem>>, vector<128x128xf32>
    tpu.vector_store %arg6[%22, %c0_14], %21 {strides = array<i32>} : memref<128x128xf32, #tpu.memory_space<vmem>>, vector<128x128xf32>,
    return
  }
  func.func @transform_0(%arg0: i32, %arg1: i32) -> (i32, i32) {
    %c0_i32 = arith.constant 0 : i32
    return %arg0, %arg1 : i32, i32
  }
  func.func @transform_1(%arg0: i32, %arg1: i32) -> (i32, i32) {
    %c0_i32 = arith.constant 0 : i32
    %c0_i32_0 = arith.constant 0 : i32
    return %arg0, %c0_i32 : i32, i32
  }
  func.func @transform_2(%arg0: i32, %arg1: i32) -> (i32, i32) {
    %c0_i32 = arith.constant 0 : i32
    %c0_i32_0 = arith.constant 0 : i32
    %c0_i32_1 = arith.constant 0 : i32
    return %c0_i32, %c0_i32_0 : i32, i32
  }
  func.func @transform_3(%arg0: i32, %arg1: i32) -> (i32, i32) {
    %c0_i32 = arith.constant 0 : i32
    %c0_i32_0 = arith.constant 0 : i32
    return %arg0, %c0_i32 : i32, i32
  }
  func.func @transform_4(%arg0: i32, %arg1: i32) -> (i32, i32) {
    %c0_i32 = arith.constant 0 : i32
    %c0_i32_0 = arith.constant 0 : i32
    %c0_i32_1 = arith.constant 0 : i32
    return %c0_i32, %c0_i32_0 : i32, i32
  }
}

</mosaic_0001>

<llo_original>
// kernel: tpu_custom_call.1
$region0: #{tpu_custom_call.1}
  #allocation0 [shape = 'u32[]', space=smem, size = 0x4, offset = 0x4, fixed_abs, tag = 'smem constant byte address 0x4 - core index']
  #allocation1 [shape = 'u32[72,128]{1,0:T(1,128)}', space=vmem, size = 0x9000, scoped, tag = 'internal scratch']
  %s0 = inlined_call_operand.hbm [shape: bf16[128,128], index: 0, kind: input, shape index: {}]
  %s1 = inlined_call_operand.hbm [shape: bf16[128,128], index: 1, kind: input, shape index: {}]
  %s2 = inlined_call_operand.hbm [shape: bf16[128,128], index: 2, kind: input, shape index: {}]
  %s3 = inlined_call_operand.hbm [shape: f32[128,128], index: 3, kind: output, shape index: {0}]
  %s4 = inlined_call_operand.hbm [shape: f32[128,128], index: 4, kind: output, shape index: {1}]
  %5 = xla_tuple %s3, %s4
  %s6 = sld [smem:[#allocation0]]
  $region50: #{tpu_custom_call.1} parent=0
    _
  %s8 = ssub.s32 1, %s6
  %s9 = scalar_select 0, %s8, %s6
  $region1: #{tpu_custom_call.1} parent=0
    #allocation2 [shape = 'u8[32768]{0}', space=vmem, size = 0x8000, scoped, tag = 'input window, operand 0, single buffered']
    #allocation3 [shape = 's32[1]{0}', space=sflag, size = 0x4, scoped, tag = 'scoped memory for tpu_custom_call.1']
    #allocation4 [shape = 's32[1]{0}', space=sflag, size = 0x4, scoped, tag = 'scoped memory for tpu_custom_call.1']
    #allocation5 [shape = 'u8[32768]{0}', space=vmem, size = 0x8000, scoped, tag = 'input window, operand 1, single buffered']
    #allocation6 [shape = 's32[1]{0}', space=sflag, size = 0x4, scoped, tag = 'scoped memory for tpu_custom_call.1']
    #allocation7 [shape = 'u8[32768]{0}', space=vmem, size = 0x8000, scoped, tag = 'input window, operand 2, single buffered']
    #allocation8 [shape = 'u8[65536]{0}', space=vmem, size = 0x10000, scoped, tag = 'output window, operand 0, single buffered']
    #allocation9 [shape = 'u8[65536]{0}', space=vmem, size = 0x10000, scoped, tag = 'output window, operand 1, single buffered']
    #allocation10 [shape = 's32[1]{0}', space=sflag, size = 0x4, scoped, tag = 'scoped memory for tpu_custom_call.1']
    %10 = vsyncpa [#allocation3], 0
    %11 = vsyncpa [#allocation6], 0
    %12 = vsyncpa [#allocation4], 0
    %13 = vsyncpa [#allocation10], 0
    // Predicated region
    $region2: #{tpu_custom_call.1} parent=1 // pred_check
      _
    $region3: #{tpu_custom_call.1} parent=1 // pred_check_branch
      %15 = sbr.rel (0) target = $region5
    $region4: #{tpu_custom_call.1} parent=1 // pred_region
      %17 = vsyncadd [#allocation3], 0
      %s18 = sshll.u32 %s0, 4
      %s19 = int_to_ptr.hbm [resolvable:$true] %s18
      %s20 = sshll.u32 [#allocation2], 4
      %s21 = int_to_ptr.vmem [resolvable:$true] %s20
      %26 = dma.hbm_to_vmem [thread:$0]  %s19, 1024, %s21, [#allocation3], 64, 64, 4
    $region5: #{tpu_custom_call.1} parent=1 // pred_fallthru
      _
    // Predicated region
    $region6: #{tpu_custom_call.1} parent=1 // pred_check
      _
    $region7: #{tpu_custom_call.1} parent=1 // pred_check_branch
      %28 = sbr.rel (0) target = $region9
    $region8: #{tpu_custom_call.1} parent=1 // pred_region
      %30 = vsyncadd [#allocation6], 0
      %s31 = sshll.u32 %s1, 4
      %s32 = int_to_ptr.hbm [resolvable:$true] %s31
      %s33 = sshll.u32 [#allocation5], 4
      %s34 = int_to_ptr.vmem [resolvable:$true] %s33
      %39 = dma.hbm_to_vmem [thread:$0]  %s32, 1024, %s34, [#allocation6], 64, 64, 4
    $region9: #{tpu_custom_call.1} parent=1 // pred_fallthru
      _
    // Predicated region
    $region10: #{tpu_custom_call.1} parent=1 // pred_check
      _
    $region11: #{tpu_custom_call.1} parent=1 // pred_check_branch
      %41 = sbr.rel (0) target = $region13
    $region12: #{tpu_custom_call.1} parent=1 // pred_region
      %43 = vsyncadd [#allocation6], 0
      %s44 = sshll.u32 %s2, 4
      %s45 = int_to_ptr.hbm [resolvable:$true] %s44
      %s46 = sshll.u32 [#allocation7], 4
      %s47 = int_to_ptr.vmem [resolvable:$true] %s46
      %52 = dma.hbm_to_vmem [thread:$0]  %s45, 1024, %s47, [#allocation6], 64, 64, 4
    $region13: #{tpu_custom_call.1} parent=1 // pred_fallthru
      _
    // Predicated region
    $region14: #{tpu_custom_call.1} parent=1 // pred_check
      _
    $region15: #{tpu_custom_call.1} parent=1 // pred_check_branch
      %54 = sbr.rel (0) target = $region17
    $region16: #{tpu_custom_call.1} parent=1 // pred_region
      %56 = dma.done [#allocation3], 1024
    $region17: #{tpu_custom_call.1} parent=1 // pred_fallthru
      _
    // Predicated region
    $region18: #{tpu_custom_call.1} parent=1 // pred_check
      _
    $region19: #{tpu_custom_call.1} parent=1 // pred_check_branch
      %58 = sbr.rel (0) target = $region21
    $region20: #{tpu_custom_call.1} parent=1 // pred_region
      %60 = dma.done [#allocation6], 1024
    $region21: #{tpu_custom_call.1} parent=1 // pred_fallthru
      _
    // Predicated region
    $region22: #{tpu_custom_call.1} parent=1 // pred_check
      _
    $region23: #{tpu_custom_call.1} parent=1 // pred_check_branch
      %62 = sbr.rel (0) target = $region25
    $region24: #{tpu_custom_call.1} parent=1 // pred_region
      %64 = dma.done [#allocation6], 1024
    $region25: #{tpu_custom_call.1} parent=1 // pred_fallthru
      _
    %p65 = scmp.eq.s32.totalorder 0, 0
    // Predicated region
    $region26: #{tpu_custom_call.1} parent=1 // pred_check
      %p66 = pneg %p65
    $region27: #{tpu_custom_call.1} parent=1 // pred_check_branch
      %68 = sbr.rel (%p66) target = $region29
    $region28: #{tpu_custom_call.1} parent=1 // pred_region
      %69 = vst [vmem:[#allocation8] sm:$0xff] 0.0
      %70 = vst [vmem:[#allocation8 + $0x8] sm:$0xff] 0.0
      %71 = vst [vmem:[#allocation8 + $0x10] sm:$0xff] 0.0
      %72 = vst [vmem:[#allocation8 + $0x18] sm:$0xff] 0.0
      %73 = vst [vmem:[#allocation8 + $0x20] sm:$0xff] 0.0
      %74 = vst [vmem:[#allocation8 + $0x28] sm:$0xff] 0.0
      %75 = vst [vmem:[#allocation8 + $0x30] sm:$0xff] 0.0
      %76 = vst [vmem:[#allocation8 + $0x38] sm:$0xff] 0.0
      %77 = vst [vmem:[#allocation8 + $0x40] sm:$0xff] 0.0
      %78 = vst [vmem:[#allocation8 + $0x48] sm:$0xff] 0.0
      %79 = vst [vmem:[#allocation8 + $0x50] sm:$0xff] 0.0
      %80 = vst [vmem:[#allocation8 + $0x58] sm:$0xff] 0.0
      %81 = vst [vmem:[#allocation8 + $0x60] sm:$0xff] 0.0
      %82 = vst [vmem:[#allocation8 + $0x68] sm:$0xff] 0.0
      %83 = vst [vmem:[#allocation8 + $0x70] sm:$0xff] 0.0
      %84 = vst [vmem:[#allocation8 + $0x78] sm:$0xff] 0.0
    $region29: #{tpu_custom_call.1} parent=1 // pred_fallthru
      _
    %p85 = scmp.eq.s32.totalorder 0, 0
    %p86 = pnand %p85, %p65
    %p87 = pneg %p86
    // Predicated region
    $region30: #{tpu_custom_call.1} parent=1 // pred_check
      _
    $region31: #{tpu_custom_call.1} parent=1 // pred_check_branch
      %89 = sbr.rel (%p86) target = $region33
    $region32: #{tpu_custom_call.1} parent=1 // pred_region
      %90 = vst [vmem:[#allocation9] sm:$0xff] 0.0
      %91 = vst [vmem:[#allocation9 + $0x8] sm:$0xff] 0.0
      %92 = vst [vmem:[#allocation9 + $0x10] sm:$0xff] 0.0
      %93 = vst [vmem:[#allocation9 + $0x18] sm:$0xff] 0.0
      %94 = vst [vmem:[#allocation9 + $0x20] sm:$0xff] 0.0
      %95 = vst [vmem:[#allocation9 + $0x28] sm:$0xff] 0.0
      %96 = vst [vmem:[#allocation9 + $0x30] sm:$0xff] 0.0
      %97 = vst [vmem:[#allocation9 + $0x38] sm:$0xff] 0.0
      %98 = vst [vmem:[#allocation9 + $0x40] sm:$0xff] 0.0
      %99 = vst [vmem:[#allocation9 + $0x48] sm:$0xff] 0.0
      %100 = vst [vmem:[#allocation9 + $0x50] sm:$0xff] 0.0
      %101 = vst [vmem:[#allocation9 + $0x58] sm:$0xff] 0.0
      %102 = vst [vmem:[#allocation9 + $0x60] sm:$0xff] 0.0
      %103 = vst [vmem:[#allocation9 + $0x68] sm:$0xff] 0.0
      %104 = vst [vmem:[#allocation9 + $0x70] sm:$0xff] 0.0
      %105 = vst [vmem:[#allocation9 + $0x78] sm:$0xff] 0.0
    $region33: #{tpu_custom_call.1} parent=1 // pred_fallthru
      _
    %v106 = vld [vmem:[#allocation2] sm:$0xf]
    %v107 = vld [vmem:[#allocation2 + $0x4] sm:$0xf]
    %v108 = vld [vmem:[#allocation2 + $0x8] sm:$0xf]
    %v109 = vld [vmem:[#allocation2 + $0xc] sm:$0xf]
    %v110 = vld [vmem:[#allocation2 + $0x10] sm:$0xf]
    %v111 = vld [vmem:[#allocation2 + $0x14] sm:$0xf]
    %v112 = vld [vmem:[#allocation2 + $0x18] sm:$0xf]
    %v113 = vld [vmem:[#allocation2 + $0x1c] sm:$0xf]
    %v114 = vld [vmem:[#allocation2 + $0x20] sm:$0xf]
    %v115 = vld [vmem:[#allocation2 + $0x24] sm:$0xf]
    %v116 = vld [vmem:[#allocation2 + $0x28] sm:$0xf]
    %v117 = vld [vmem:[#allocation2 + $0x2c] sm:$0xf]
    %v118 = vld [vmem:[#allocation2 + $0x30] sm:$0xf]
    %v119 = vld [vmem:[#allocation2 + $0x34] sm:$0xf]
    %v120 = vld [vmem:[#allocation2 + $0x38] sm:$0xf]
    %v121 = vld [vmem:[#allocation2 + $0x3c] sm:$0xf]
    %s122 = smul.u32 0, 128
    %v123 = vld [vmem:[#allocation8] sm:$0xff]
    %v124 = vld [vmem:[#allocation8 + $0x8] sm:$0xff]
    %v125 = vld [vmem:[#allocation8 + $0x10] sm:$0xff]
    %v126 = vld [vmem:[#allocation8 + $0x18] sm:$0xff]
    %v127 = vld [vmem:[#allocation8 + $0x20] sm:$0xff]
    %v128 = vld [vmem:[#allocation8 + $0x28] sm:$0xff]
    %v129 = vld [vmem:[#allocation8 + $0x30] sm:$0xff]
    %v130 = vld [vmem:[#allocation8 + $0x38] sm:$0xff]
    %v131 = vld [vmem:[#allocation8 + $0x40] sm:$0xff]
    %v132 = vld [vmem:[#allocation8 + $0x48] sm:$0xff]
    %v133 = vld [vmem:[#allocation8 + $0x50] sm:$0xff]
    %v134 = vld [vmem:[#allocation8 + $0x58] sm:$0xff]
    %v135 = vld [vmem:[#allocation8 + $0x60] sm:$0xff]
    %v136 = vld [vmem:[#allocation8 + $0x68] sm:$0xff]
    %v137 = vld [vmem:[#allocation8 + $0x70] sm:$0xff]
    %v138 = vld [vmem:[#allocation8 + $0x78] sm:$0xff]
    %s139 = sshra.s32 %s122, 3
    %s140 = sand.u32 %s122, 7
    %s141 = smul.addr %s139, 4
    %s142 = scalar_lea.vmem [#allocation7], %s141
    %v143 = vld [vmem:[%s142] sm:$0xf]
    %v144 = vld [vmem:[%s142 + $0x4] sm:$0xf]
    %v145 = vld [vmem:[%s142 + $0x8] sm:$0xf]
    %v146 = vld [vmem:[%s142 + $0xc] sm:$0xf]
    %v147 = vld [vmem:[%s142 + $0x10] sm:$0xf]
    %v148 = vld [vmem:[%s142 + $0x14] sm:$0xf]
    %v149 = vld [vmem:[%s142 + $0x18] sm:$0xf]
    %v150 = vld [vmem:[%s142 + $0x1c] sm:$0xf]
    %v151 = vld [vmem:[%s142 + $0x20] sm:$0xf]
    %v152 = vld [vmem:[%s142 + $0x24] sm:$0xf]
    %v153 = vld [vmem:[%s142 + $0x28] sm:$0xf]
    %v154 = vld [vmem:[%s142 + $0x2c] sm:$0xf]
    %v155 = vld [vmem:[%s142 + $0x30] sm:$0xf]
    %v156 = vld [vmem:[%s142 + $0x34] sm:$0xf]
    %v157 = vld [vmem:[%s142 + $0x38] sm:$0xf]
    %v158 = vld [vmem:[%s142 + $0x3c] sm:$0xf]
    %v175 = vunpack.c.l.b16 %v106
    %v176 = vunpack.c.l.b16 %v107
    %v177 = vunpack.c.l.b16 %v108
    %v178 = vunpack.c.l.b16 %v109
    %v179 = vunpack.c.l.b16 %v110
    %v180 = vunpack.c.l.b16 %v111
    %v181 = vunpack.c.l.b16 %v112
    %v182 = vunpack.c.l.b16 %v113
    %v183 = vunpack.c.l.b16 %v114
    %v184 = vunpack.c.l.b16 %v115
    %v185 = vunpack.c.l.b16 %v116
    %v186 = vunpack.c.l.b16 %v117
    %v187 = vunpack.c.l.b16 %v118
    %v188 = vunpack.c.l.b16 %v119
    %v189 = vunpack.c.l.b16 %v120
    %v190 = vunpack.c.l.b16 %v121
    %v191 = vpack.c.b16 %v176, %v175
    %v192 = vpack.c.b16 %v178, %v177
    %v193 = vpack.c.b16 %v180, %v179
    %v194 = vpack.c.b16 %v182, %v181
    %v195 = vpack.c.b16 %v184, %v183
    %v196 = vpack.c.b16 %v186, %v185
    %v197 = vpack.c.b16 %v188, %v187
    %v198 = vpack.c.b16 %v190, %v189
    %v223 = vunpack.c.l.b16 %v143
    %v224 = vunpack.c.l.b16 %v144
    %v225 = vunpack.c.l.b16 %v145
    %v226 = vunpack.c.l.b16 %v146
    %v227 = vunpack.c.l.b16 %v147
    %v228 = vunpack.c.l.b16 %v148
    %v229 = vunpack.c.l.b16 %v149
    %v230 = vunpack.c.l.b16 %v150
    %v231 = vunpack.c.l.b16 %v151
    %v232 = vunpack.c.l.b16 %v152
    %v233 = vunpack.c.l.b16 %v153
    %v234 = vunpack.c.l.b16 %v154
    %v235 = vunpack.c.l.b16 %v155
    %v236 = vunpack.c.l.b16 %v156
    %v237 = vunpack.c.l.b16 %v157
    %v238 = vunpack.c.l.b16 %v158
    %v239 = vpack.c.b16 %v224, %v223
    %v240 = vpack.c.b16 %v226, %v225
    %v241 = vpack.c.b16 %v228, %v227
    %v242 = vpack.c.b16 %v230, %v229
    %v243 = vpack.c.b16 %v232, %v231
    %v244 = vpack.c.b16 %v234, %v233
    %v245 = vpack.c.b16 %v236, %v235
    %v246 = vpack.c.b16 %v238, %v237
    %255 = vmatpush.bf16.msra.mxu0 %v246
    %256 = vmatpush.bf16.msra.mxu0 %v245
    %257 = vmatpush.bf16.msra.mxu0 %v244
    %258 = vmatpush.bf16.msra.mxu0 %v243
    %259 = vmatpush.bf16.msra.mxu0 %v242
    %260 = vmatpush.bf16.msra.mxu0 %v241
    %261 = vmatpush.bf16.msra.mxu0 %v240
    %262 = vmatpush.bf16.msra.mxu0 %v239
    %263 = vmatmul.bf16.gmra.mxu0 %v191
    %v264 = vpop.f32.mrf.mxu0
    %v265 = vadd.f32 0.0, %v264
    %v266 = vpop.f32.mrf.mxu0
    %v267 = vadd.f32 0.0, %v266
    %268 = vmatmul.bf16.gmra.mxu0 %v192
    %v269 = vpop.f32.mrf.mxu0
    %v270 = vadd.f32 0.0, %v269
    %v271 = vpop.f32.mrf.mxu0
    %v272 = vadd.f32 0.0, %v271
    %273 = vmatmul.bf16.gmra.mxu0 %v193
    %v274 = vpop.f32.mrf.mxu0
    %v275 = vadd.f32 0.0, %v274
    %v276 = vpop.f32.mrf.mxu0
    %v277 = vadd.f32 0.0, %v276
    %278 = vmatmul.bf16.gmra.mxu0 %v194
    %v279 = vpop.f32.mrf.mxu0
    %v280 = vadd.f32 0.0, %v279
    %v281 = vpop.f32.mrf.mxu0
    %v282 = vadd.f32 0.0, %v281
    %283 = vmatmul.bf16.gmra.mxu0 %v195
    %v284 = vpop.f32.mrf.mxu0
    %v285 = vadd.f32 0.0, %v284
    %v286 = vpop.f32.mrf.mxu0
    %v287 = vadd.f32 0.0, %v286
    %288 = vmatmul.bf16.gmra.mxu0 %v196
    %v289 = vpop.f32.mrf.mxu0
    %v290 = vadd.f32 0.0, %v289
    %v291 = vpop.f32.mrf.mxu0
    %v292 = vadd.f32 0.0, %v291
    %293 = vmatmul.bf16.gmra.mxu0 %v197
    %v294 = vpop.f32.mrf.mxu0
    %v295 = vadd.f32 0.0, %v294
    %v296 = vpop.f32.mrf.mxu0
    %v297 = vadd.f32 0.0, %v296
    %298 = vmatmul.bf16.gmra.mxu0 %v198
    %v299 = vpop.f32.mrf.mxu0
    %v300 = vadd.f32 0.0, %v299
    %v301 = vpop.f32.mrf.mxu0
    %v302 = vadd.f32 0.0, %v301
    %303 = vdwg.mxu0
    %v304 = vadd.f32 %v123, %v265
    %v305 = vadd.f32 %v124, %v267
    %v306 = vadd.f32 %v125, %v270
    %v307 = vadd.f32 %v126, %v272
    %v308 = vadd.f32 %v127, %v275
    %v309 = vadd.f32 %v128, %v277
    %v310 = vadd.f32 %v129, %v280
    %v311 = vadd.f32 %v130, %v282
    %v312 = vadd.f32 %v131, %v285
    %v313 = vadd.f32 %v132, %v287
    %v314 = vadd.f32 %v133, %v290
    %v315 = vadd.f32 %v134, %v292
    %v316 = vadd.f32 %v135, %v295
    %v317 = vadd.f32 %v136, %v297
    %v318 = vadd.f32 %v137, %v300
    %v319 = vadd.f32 %v138, %v302
    %320 = vst [vmem:[#allocation8] sm:$0xff] %v304
    %321 = vst [vmem:[#allocation8 + $0x8] sm:$0xff] %v305
    %322 = vst [vmem:[#allocation8 + $0x10] sm:$0xff] %v306
    %323 = vst [vmem:[#allocation8 + $0x18] sm:$0xff] %v307
    %324 = vst [vmem:[#allocation8 + $0x20] sm:$0xff] %v308
    %325 = vst [vmem:[#allocation8 + $0x28] sm:$0xff] %v309
    %326 = vst [vmem:[#allocation8 + $0x30] sm:$0xff] %v310
    %327 = vst [vmem:[#allocation8 + $0x38] sm:$0xff] %v311
    %328 = vst [vmem:[#allocation8 + $0x40] sm:$0xff] %v312
    %329 = vst [vmem:[#allocation8 + $0x48] sm:$0xff] %v313
    %330 = vst [vmem:[#allocation8 + $0x50] sm:$0xff] %v314
    %331 = vst [vmem:[#allocation8 + $0x58] sm:$0xff] %v315
    %332 = vst [vmem:[#allocation8 + $0x60] sm:$0xff] %v316
    %333 = vst [vmem:[#allocation8 + $0x68] sm:$0xff] %v317
    %334 = vst [vmem:[#allocation8 + $0x70] sm:$0xff] %v318
    %335 = vst [vmem:[#allocation8 + $0x78] sm:$0xff] %v319
    %v336 = vld [vmem:[#allocation5] sm:$0xf]
    %v337 = vld [vmem:[#allocation5 + $0x4] sm:$0xf]
    %v338 = vld [vmem:[#allocation5 + $0x8] sm:$0xf]
    %v339 = vld [vmem:[#allocation5 + $0xc] sm:$0xf]
    %v340 = vld [vmem:[#allocation5 + $0x10] sm:$0xf]
    %v341 = vld [vmem:[#allocation5 + $0x14] sm:$0xf]
    %v342 = vld [vmem:[#allocation5 + $0x18] sm:$0xf]
    %v343 = vld [vmem:[#allocation5 + $0x1c] sm:$0xf]
    %v344 = vld [vmem:[#allocation5 + $0x20] sm:$0xf]
    %v345 = vld [vmem:[#allocation5 + $0x24] sm:$0xf]
    %v346 = vld [vmem:[#allocation5 + $0x28] sm:$0xf]
    %v347 = vld [vmem:[#allocation5 + $0x2c] sm:$0xf]
    %v348 = vld [vmem:[#allocation5 + $0x30] sm:$0xf]
    %v349 = vld [vmem:[#allocation5 + $0x34] sm:$0xf]
    %v350 = vld [vmem:[#allocation5 + $0x38] sm:$0xf]
    %v351 = vld [vmem:[#allocation5 + $0x3c] sm:$0xf]
    %352 = vxpose.xlu0.c.b16.start [1/8] %v191, 128
    %353 = vxpose.xlu0.c.b16.cont [2/8] %v192, 128
    %354 = vxpose.xlu0.c.b16.cont [3/8] %v193, 128
    %355 = vxpose.xlu0.c.b16.cont [4/8] %v194, 128
    %356 = vxpose.xlu0.c.b16.cont [5/8] %v195, 128
    %357 = vxpose.xlu0.c.b16.cont [6/8] %v196, 128
    %358 = vxpose.xlu0.c.b16.cont [7/8] %v197, 128
    %359 = vxpose.xlu0.c.b16.end [8/8] %v198, 128
    %v360 = vpop.trf.xlu0
    %v361 = vpop.trf.xlu0
    %v362 = vpop.trf.xlu0
    %v363 = vpop.trf.xlu0
    %v364 = vpop.trf.xlu0
    %v365 = vpop.trf.xlu0
    %v366 = vpop.trf.xlu0
    %v367 = vpop.trf.xlu0
    %v384 = vunpack.c.l.b16 %v336
    %v385 = vunpack.c.l.b16 %v337
    %v386 = vunpack.c.l.b16 %v338
    %v387 = vunpack.c.l.b16 %v339
    %v388 = vunpack.c.l.b16 %v340
    %v389 = vunpack.c.l.b16 %v341
    %v390 = vunpack.c.l.b16 %v342
    %v391 = vunpack.c.l.b16 %v343
    %v392 = vunpack.c.l.b16 %v344
    %v393 = vunpack.c.l.b16 %v345
    %v394 = vunpack.c.l.b16 %v346
    %v395 = vunpack.c.l.b16 %v347
    %v396 = vunpack.c.l.b16 %v348
    %v397 = vunpack.c.l.b16 %v349
    %v398 = vunpack.c.l.b16 %v350
    %v399 = vunpack.c.l.b16 %v351
    %v400 = vpack.c.b16 %v385, %v384
    %v401 = vpack.c.b16 %v387, %v386
    %v402 = vpack.c.b16 %v389, %v388
    %v403 = vpack.c.b16 %v391, %v390
    %v404 = vpack.c.b16 %v393, %v392
    %v405 = vpack.c.b16 %v395, %v394
    %v406 = vpack.c.b16 %v397, %v396
    %v407 = vpack.c.b16 %v399, %v398
    %416 = vmatpush.bf16.msra.mxu0 %v407
    %417 = vmatpush.bf16.msra.mxu0 %v406
    %418 = vmatpush.bf16.msra.mxu0 %v405
    %419 = vmatpush.bf16.msra.mxu0 %v404
    %420 = vmatpush.bf16.msra.mxu0 %v403
    %421 = vmatpush.bf16.msra.mxu0 %v402
    %422 = vmatpush.bf16.msra.mxu0 %v401
    %423 = vmatpush.bf16.msra.mxu0 %v400
    %424 = vmatmul.bf16.gmra.mxu0 %v360
    %v425 = vpop.f32.mrf.mxu0
    %v426 = vadd.f32 0.0, %v425
    %v427 = vpop.f32.mrf.mxu0
    %v428 = vadd.f32 0.0, %v427
    %429 = vmatmul.bf16.gmra.mxu0 %v361
    %v430 = vpop.f32.mrf.mxu0
    %v431 = vadd.f32 0.0, %v430
    %v432 = vpop.f32.mrf.mxu0
    %v433 = vadd.f32 0.0, %v432
    %434 = vmatmul.bf16.gmra.mxu0 %v362
    %v435 = vpop.f32.mrf.mxu0
    %v436 = vadd.f32 0.0, %v435
    %v437 = vpop.f32.mrf.mxu0
    %v438 = vadd.f32 0.0, %v437
    %439 = vmatmul.bf16.gmra.mxu0 %v363
    %v440 = vpop.f32.mrf.mxu0
    %v441 = vadd.f32 0.0, %v440
    %v442 = vpop.f32.mrf.mxu0
    %v443 = vadd.f32 0.0, %v442
    %444 = vmatmul.bf16.gmra.mxu0 %v364
    %v445 = vpop.f32.mrf.mxu0
    %v446 = vadd.f32 0.0, %v445
    %v447 = vpop.f32.mrf.mxu0
    %v448 = vadd.f32 0.0, %v447
    %449 = vmatmul.bf16.gmra.mxu0 %v365
    %v450 = vpop.f32.mrf.mxu0
    %v451 = vadd.f32 0.0, %v450
    %v452 = vpop.f32.mrf.mxu0
    %v453 = vadd.f32 0.0, %v452
    %454 = vmatmul.bf16.gmra.mxu0 %v366
    %v455 = vpop.f32.mrf.mxu0
    %v456 = vadd.f32 0.0, %v455
    %v457 = vpop.f32.mrf.mxu0
    %v458 = vadd.f32 0.0, %v457
    %459 = vmatmul.bf16.gmra.mxu0 %v367
    %v460 = vpop.f32.mrf.mxu0
    %v461 = vadd.f32 0.0, %v460
    %v462 = vpop.f32.mrf.mxu0
    %v463 = vadd.f32 0.0, %v462
    %464 = vdwg.mxu0
    %s465 = scalar_lea.vmem [#allocation9], %s122
    %v466 = vld [vmem:[%s465] sm:$0xff]
    %v467 = vld [vmem:[%s465 + $0x8] sm:$0xff]
    %v468 = vld [vmem:[%s465 + $0x10] sm:$0xff]
    %v469 = vld [vmem:[%s465 + $0x18] sm:$0xff]
    %v470 = vld [vmem:[%s465 + $0x20] sm:$0xff]
    %v471 = vld [vmem:[%s465 + $0x28] sm:$0xff]
    %v472 = vld [vmem:[%s465 + $0x30] sm:$0xff]
    %v473 = vld [vmem:[%s465 + $0x38] sm:$0xff]
    %v474 = vld [vmem:[%s465 + $0x40] sm:$0xff]
    %v475 = vld [vmem:[%s465 + $0x48] sm:$0xff]
    %v476 = vld [vmem:[%s465 + $0x50] sm:$0xff]
    %v477 = vld [vmem:[%s465 + $0x58] sm:$0xff]
    %v478 = vld [vmem:[%s465 + $0x60] sm:$0xff]
    %v479 = vld [vmem:[%s465 + $0x68] sm:$0xff]
    %v480 = vld [vmem:[%s465 + $0x70] sm:$0xff]
    %v481 = vld [vmem:[%s465 + $0x78] sm:$0xff]
    %v482 = vadd.f32 %v466, %v426
    %v483 = vadd.f32 %v467, %v428
    %v484 = vadd.f32 %v468, %v431
    %v485 = vadd.f32 %v469, %v433
    %v486 = vadd.f32 %v470, %v436
    %v487 = vadd.f32 %v471, %v438
    %v488 = vadd.f32 %v472, %v441
    %v489 = vadd.f32 %v473, %v443
    %v490 = vadd.f32 %v474, %v446
    %v491 = vadd.f32 %v475, %v448
    %v492 = vadd.f32 %v476, %v451
    %v493 = vadd.f32 %v477, %v453
    %v494 = vadd.f32 %v478, %v456
    %v495 = vadd.f32 %v479, %v458
    %v496 = vadd.f32 %v480, %v461
    %v497 = vadd.f32 %v481, %v463
    %498 = vst [vmem:[%s465] sm:$0xff] %v482
    %499 = vst [vmem:[%s465 + $0x8] sm:$0xff] %v483
    %500 = vst [vmem:[%s465 + $0x10] sm:$0xff] %v484
    %501 = vst [vmem:[%s465 + $0x18] sm:$0xff] %v485
    %502 = vst [vmem:[%s465 + $0x20] sm:$0xff] %v486
    %503 = vst [vmem:[%s465 + $0x28] sm:$0xff] %v487
    %504 = vst [vmem:[%s465 + $0x30] sm:$0xff] %v488
    %505 = vst [vmem:[%s465 + $0x38] sm:$0xff] %v489
    %506 = vst [vmem:[%s465 + $0x40] sm:$0xff] %v490
    %507 = vst [vmem:[%s465 + $0x48] sm:$0xff] %v491
    %508 = vst [vmem:[%s465 + $0x50] sm:$0xff] %v492
    %509 = vst [vmem:[%s465 + $0x58] sm:$0xff] %v493
    %510 = vst [vmem:[%s465 + $0x60] sm:$0xff] %v494
    %511 = vst [vmem:[%s465 + $0x68] sm:$0xff] %v495
    %512 = vst [vmem:[%s465 + $0x70] sm:$0xff] %v496
    %513 = vst [vmem:[%s465 + $0x78] sm:$0xff] %v497
    // Predicated region
    $region34: #{tpu_custom_call.1} parent=1 // pred_check
      _
    $region35: #{tpu_custom_call.1} parent=1 // pred_check_branch
      %515 = sbr.rel (0) target = $region37
    $region36: #{tpu_custom_call.1} parent=1 // pred_region
      %517 = vsyncadd [#allocation4], 0
      %s518 = sshll.u32 [#allocation8], 4
      %s519 = int_to_ptr.vmem [resolvable:$true] %s518
      %s520 = sshll.u32 %s3, 4
      %s521 = int_to_ptr.hbm [resolvable:$true] %s520
      %526 = dma.vmem_to_hbm [thread:$0]  %s519, 2048, %s521, [#allocation4], 128, 128, 8
    $region37: #{tpu_custom_call.1} parent=1 // pred_fallthru
      _
    // Predicated region
    $region38: #{tpu_custom_call.1} parent=1 // pred_check
      _
    $region39: #{tpu_custom_call.1} parent=1 // pred_check_branch
      %528 = sbr.rel (0) target = $region41
    $region40: #{tpu_custom_call.1} parent=1 // pred_region
      %530 = vsyncadd [#allocation10], 0
      %s531 = sshll.u32 [#allocation9], 4
      %s532 = int_to_ptr.vmem [resolvable:$true] %s531
      %s533 = sshll.u32 %s4, 4
      %s534 = int_to_ptr.hbm [resolvable:$true] %s533
      %539 = dma.vmem_to_hbm [thread:$0]  %s532, 2048, %s534, [#allocation10], 128, 128, 8
    $region41: #{tpu_custom_call.1} parent=1 // pred_fallthru
      _
    // Predicated region
    $region42: #{tpu_custom_call.1} parent=1 // pred_check
      _
    $region43: #{tpu_custom_call.1} parent=1 // pred_check_branch
      %541 = sbr.rel (0) target = $region45
    $region44: #{tpu_custom_call.1} parent=1 // pred_region
      %543 = dma.done [#allocation4], 2048
    $region45: #{tpu_custom_call.1} parent=1 // pred_fallthru
      _
    // Predicated region
    $region46: #{tpu_custom_call.1} parent=1 // pred_check
      _
    $region47: #{tpu_custom_call.1} parent=1 // pred_check_branch
      %545 = sbr.rel (0) target = $region49
    $region48: #{tpu_custom_call.1} parent=1 // pred_region
      %547 = dma.done [#allocation10], 2048
    $region49: #{tpu_custom_call.1} parent=1 // pred_fallthru
      _
    %548 = vsyncpa [#allocation3], 1
    %549 = vsyncpa [#allocation6], 1
    %550 = vsyncpa [#allocation4], 1
    %551 = vsyncpa [#allocation10], 1

</llo_original>
